<compile_context>
chip_gen: v6e
topology: v6e:2x2x1
jax: 0.10.0
libtpu: 0.0.40
codegen_flags: <defaults>
</compile_context>

<pallas_src>
from functools import partial

import jax
import jax.numpy as jnp
from jax.experimental import pallas as pl
from jax.experimental.pallas import tpu as pltpu


def _round_up(x, m):
    return (x + m - 1) // m * m


def _cdiv(a, b):
    return -(-a // b)


def _default_act_dtype():
    """bf16 tanh/activations on v6e/v7x (bf16 VPU/EUP); f32 elsewhere (v5e-safe)."""
    try:
        kind = jax.devices()[0].device_kind.lower()
        if "v6" in kind or "v7" in kind:
            return jnp.bfloat16
    except Exception:
        pass
    return jnp.float32


def _critic_kernel(x_ref, w1_ref, b1_ref, w2_ref, b2_ref, w3_ref, b3_ref, o_ref,
                   *, act_dtype):
    # x_ref: (TB, S) f32 (HBM copy stays f32; cast here on the VPU),
    # w1: (S, Hp), w2: (Hp, Hp)  [MXU dtype, typically bf16],
    # b1/b2/w3: (1, Hp) f32, b3: (1, 1) f32 scalar in SMEM,
    # o_ref: (1, 1, TB) f32 lane-dense output row.
    x = x_ref[...]
    if x.dtype != w1_ref.dtype:
        x = x.astype(w1_ref.dtype)                              # in-kernel cast

    # Layer 1: MXU matmul, f32 accumulate; bias + tanh in act_dtype.
    z1 = jnp.dot(x, w1_ref[...], preferred_element_type=jnp.float32) + b1_ref[...]
    h1 = jnp.tanh(z1.astype(act_dtype))                         # (TB, Hp)
    if h1.dtype != w2_ref.dtype:
        h1 = h1.astype(w2_ref.dtype)

    # Layer 2.
    z2 = jnp.dot(h1, w2_ref[...], preferred_element_type=jnp.float32) + b2_ref[...]
    h2 = jnp.tanh(z2.astype(act_dtype))                         # (TB, Hp)

    # Layer 3 (hidden -> 1): VPU broadcast-multiply + lane reduction in f32.
    # Padded hidden columns are exactly zero, so they contribute nothing.
    vals = jnp.sum(h2.astype(jnp.float32) * w3_ref[...], axis=-1) + b3_ref[0, 0]
    o_ref[...] = vals.reshape(o_ref.shape).astype(o_ref.dtype)  # (1, 1, TB)


def prepare_critic_params(params, *, mxu_dtype=jnp.bfloat16):
    """One-time padding / casting of the weights (hoisted out of the forward).

    Weights are stored (in_features, out_features). Hidden is zero-padded to a
    full 128-lane width (exact no-op through tanh); w1/w2 are cast to the MXU
    dtype (bf16 default: ~3x fewer MXU passes on every TPU generation)."""
    w1, b1, w2, b2, w3, b3 = params
    S, H = w1.shape
    Hp = _round_up(H, 128)
    pad = Hp - H

    b1 = jnp.asarray(b1, jnp.float32).reshape(1, -1)
    b2 = jnp.asarray(b2, jnp.float32).reshape(1, -1)
    w3 = jnp.asarray(w3, jnp.float32).reshape(-1, 1)
    if pad:
        w1 = jnp.pad(w1, ((0, 0), (0, pad)))
        b1 = jnp.pad(b1, ((0, 0), (0, pad)))
        w2 = jnp.pad(w2, ((0, pad), (0, pad)))
        b2 = jnp.pad(b2, ((0, 0), (0, pad)))
        w3 = jnp.pad(w3, ((0, pad), (0, 0)))

    return {
        "w1": w1.astype(mxu_dtype),
        "b1": b1,
        "w2": w2.astype(mxu_dtype),
        "b2": b2,
        "w3_row": w3.reshape(1, Hp).astype(jnp.float32),   # VPU final layer
        "b3": jnp.asarray(b3, jnp.float32).reshape(1, 1),  # SMEM scalar
        "state_dim": int(S),
        "hidden_padded": int(Hp),
    }


def _choose_tiling(B, block_batch):
    """Pick (TB, G, Bp): lane-aligned batch tile, grid length, padded batch.

    - TB is a multiple of 128 (full-lane output stores, sublane-aligned state).
    - TB is capped at 8192 so tiles fit the explicit 32 MiB VMEM budget on all
      generations (v7x has only 64 MiB physical / 32 MiB scoped).
    - When the batch is split, G is made even so v7x megacore keeps both
      TensorCores busy (e.g. B=2500 -> 2 x 1280, not 3 x 1024).
    - Padding is skipped entirely when the tile divides B."""
    ALIGN = 128
    MAX_TB = 8192
    bb = int(min(max(block_batch, ALIGN), MAX_TB))

    G = _cdiv(B, bb)
    if G == 1 and B >= 1024:      # enough rows to split across 2 TCs (v7x)
        G = 2
    if G > 1 and G % 2:           # even grid for balanced megacore sharding
        G += 1
    TB = min(_round_up(_cdiv(B, G), ALIGN), MAX_TB)
    G = _cdiv(B, TB)
    if G > 1 and G % 2:
        G += 1
    Bp = G * TB
    return TB, G, Bp


def critic_forward(state, prepared, *, block_batch=4096, act_dtype=None):
    """Fused Critic forward. state: (B, state_dim) f32 -> (B, 1) f32.

    `prepared` comes from prepare_critic_params(). `act_dtype` controls the
    bias-add/tanh precision (defaults to bf16 on v6e/v7x, f32 elsewhere)."""
    B, S = state.shape
    assert S == prepared["state_dim"]
    Hp = prepared["hidden_padded"]
    if act_dtype is None:
        act_dtype = _default_act_dtype()

    TB, G, Bp = _choose_tiling(B, block_batch)
    if Bp != B:                           # only pad the ragged tail when needed
        state = jnp.pad(state, ((0, Bp - B), (0, 0)))

    def const_spec(shape):                # weights/biases: resident across tiles
        return pl.BlockSpec(shape, lambda i: (0, 0))

    out = pl.pallas_call(
        partial(_critic_kernel, act_dtype=act_dtype),
        out_shape=jax.ShapeDtypeStruct((G, 1, TB), jnp.float32),
        grid=(G,),
        in_specs=[
            pl.BlockSpec((TB, S), lambda i: (i, 0)),            # state (streamed)
            const_spec((S, Hp)),                                 # w1
            const_spec((1, Hp)),                                 # b1
            const_spec((Hp, Hp)),                                # w2
            const_spec((1, Hp)),                                 # b2
            const_spec((1, Hp)),                                 # w3 (row)
            pl.BlockSpec(memory_space=pltpu.MemorySpace.SMEM),   # b3 scalar
        ],
        out_specs=pl.BlockSpec((1, 1, TB), lambda i: (i, 0, 0)),
        compiler_params=pltpu.CompilerParams(
            dimension_semantics=("parallel",),                   # v7x megacore
            vmem_limit_bytes=32 * 1024 * 1024,                   # safe on all gens
        ),
    )(state, prepared["w1"], prepared["b1"], prepared["w2"], prepared["b2"],
      prepared["w3_row"], prepared["b3"])

    return out.reshape(Bp, 1)[:B]


def init_critic_params(key, state_dim, hidden_size=64):
    """Deterministic init mimicking nn.Linear uniform(-1/sqrt(fan_in), 1/sqrt(fan_in)).
    Weights stored as (in_features, out_features)."""
    ks = jax.random.split(key, 6)

    def linear(kw, kb, fan_in, fan_out):
        bound = 1.0 / jnp.sqrt(fan_in)
        w = jax.random.uniform(kw, (fan_in, fan_out), jnp.float32, -bound, bound)
        b = jax.random.uniform(kb, (1, fan_out), jnp.float32, -bound, bound)
        return w, b

    w1, b1 = linear(ks[0], ks[1], state_dim, hidden_size)
    w2, b2 = linear(ks[2], ks[3], hidden_size, hidden_size)
    w3, b3 = linear(ks[4], ks[5], hidden_size, 1)
    return (w1, b1, w2, b2, w3, b3)


def critic_reference(state, params):
    w1, b1, w2, b2, w3, b3 = params
    h1 = jnp.tanh(state @ w1 + b1)
    h2 = jnp.tanh(h1 @ w2 + b2)
    return h2 @ w3 + b3


if __name__ == "__main__":
    key = jax.random.PRNGKey(0)
    k_params, k_state, k_big = jax.random.split(key, 3)

    state_dim, hidden = 4, 64
    params = init_critic_params(k_params, state_dim, hidden)

    # --- Exact-precision path (f32 MXU + f32 tanh): strict correctness check.
    prep_f32 = prepare_critic_params(params, mxu_dtype=jnp.float32)
    state_small = jax.random.normal(k_state, (8, state_dim), jnp.float32)
    out_small = jax.block_until_ready(
        critic_forward(state_small, prep_f32, act_dtype=jnp.float32))
    ref_small = critic_reference(state_small, params)
    assert out_small.shape == (8, 1)
    assert jnp.allclose(out_small, ref_small, atol=1e-5, rtol=1e-5)

    # --- Default fast path (bf16 MXU operands, bf16 tanh on v6e/v7x).
    prep = prepare_critic_params(params)          # bf16 MXU default

    # Small batch (single tile).
    out_small_fast = jax.block_until_ready(critic_forward(state_small, prep))
    assert out_small_fast.shape == (8, 1)
    assert float(jnp.max(jnp.abs(out_small_fast - ref_small))) < 1e-1

    # Larger, non-multiple batch: exercises even multi-tile grid (2 x 1280)
    # + minimal batch padding.
    state_big = jax.random.normal(k_big, (2500, state_dim), jnp.float32)
    out_big = jax.block_until_ready(critic_forward(state_big, prep))
    ref_big = critic_reference(state_big, params)
    assert out_big.shape == (2500, 1)
    assert float(jnp.max(jnp.abs(out_big - ref_big))) < 1e-1

    print("KERNEL_OK")
</pallas_src>

<mosaic_0001>
module attributes {stable_mosaic.version = 11 : i64} {
  func.func @_critic_kernel(%arg0: i32, %arg1: memref<128x4xf32, #tpu.memory_space<vmem>>, %arg2: memref<4x128xf32, #tpu.memory_space<vmem>>, %arg3: memref<1x128xf32, #tpu.memory_space<vmem>>, %arg4: memref<128x128xf32, #tpu.memory_space<vmem>>, %arg5: memref<1x128xf32, #tpu.memory_space<vmem>>, %arg6: memref<1x128xf32, #tpu.memory_space<vmem>>, %arg7: memref<1x1xf32, #tpu.memory_space<smem>>, %arg8: memref<1x1x128xf32, #tpu.memory_space<vmem>>) attributes {dimension_semantics = [#tpu.dimension_semantics<parallel>], iteration_bounds = array<i64: 1>, scalar_prefetch = 0 : i64, scratch_operands = 0 : i64, tpu.core_type = #tpu.core_type<tc>, window_params = [{transform_indices = @transform_0, window_bounds = array<i64: 128, 4>}, {pipeline_mode = #tpu.pipeline_mode<synchronous>, transform_indices = @transform_1, window_bounds = array<i64: 4, 128>}, {pipeline_mode = #tpu.pipeline_mode<synchronous>, transform_indices = @transform_2, window_bounds = array<i64: 1, 128>}, {pipeline_mode = #tpu.pipeline_mode<synchronous>, transform_indices = @transform_3, window_bounds = array<i64: 128, 128>}, {pipeline_mode = #tpu.pipeline_mode<synchronous>, transform_indices = @transform_4, window_bounds = array<i64: 1, 128>}, {pipeline_mode = #tpu.pipeline_mode<synchronous>, transform_indices = @transform_5, window_bounds = array<i64: 1, 128>}, {transform_indices = @transform_6, window_bounds = array<i64: 1, 1>}, {transform_indices = @transform_7, window_bounds = array<i64: 1, 1, 128>}]} {
    %c0 = arith.constant 0 : index
    %c0_0 = arith.constant 0 : index
    %0 = vector.load %arg1[%c0, %c0_0] : memref<128x4xf32, #tpu.memory_space<vmem>>, vector<128x4xf32>
    %c0_1 = arith.constant 0 : index
    %c0_2 = arith.constant 0 : index
    %1 = vector.load %arg2[%c0_1, %c0_2] : memref<4x128xf32, #tpu.memory_space<vmem>>, vector<4x128xf32>
    %cst = arith.constant dense<0.000000e+00> : vector<128x128xf32>
    %2 = tpu.matmul %0, %1, %cst {dimension_numbers = #tpu.dot_dimension_numbers<[1], [0], [0], [1], [0, 0, 1, 1], [], []>} : vector<128x4xf32>, vector<4x128xf32>, vector<128x128xf32> -> vector<128x128xf32>
    %c0_3 = arith.constant 0 : index
    %c0_4 = arith.constant 0 : index
    %3 = vector.load %arg3[%c0_3, %c0_4] : memref<1x128xf32, #tpu.memory_space<vmem>>, vector<1x128xf32>
    %4 = vector.broadcast %3 : vector<1x128xf32> to vector<128x128xf32>
    %5 = arith.addf %2, %4 : vector<128x128xf32>
    %6 = math.tanh %5 : vector<128x128xf32>
    %c0_5 = arith.constant 0 : index
    %c0_6 = arith.constant 0 : index
    %7 = vector.load %arg4[%c0_5, %c0_6] : memref<128x128xf32, #tpu.memory_space<vmem>>, vector<128x128xf32>
    %cst_7 = arith.constant dense<0.000000e+00> : vector<128x128xf32>
    %8 = tpu.matmul %6, %7, %cst_7 {dimension_numbers = #tpu.dot_dimension_numbers<[1], [0], [0], [1], [0, 0, 1, 1], [], []>} : vector<128x128xf32>, vector<128x128xf32>, vector<128x128xf32> -> vector<128x128xf32>
    %c0_8 = arith.constant 0 : index
    %c0_9 = arith.constant 0 : index
    %9 = vector.load %arg5[%c0_8, %c0_9] : memref<1x128xf32, #tpu.memory_space<vmem>>, vector<1x128xf32>
    %10 = vector.broadcast %9 : vector<1x128xf32> to vector<128x128xf32>
    %11 = arith.addf %8, %10 : vector<128x128xf32>
    %12 = math.tanh %11 : vector<128x128xf32>
    %c0_10 = arith.constant 0 : index
    %c0_11 = arith.constant 0 : index
    %13 = vector.load %arg6[%c0_10, %c0_11] : memref<1x128xf32, #tpu.memory_space<vmem>>, vector<1x128xf32>
    %14 = vector.broadcast %13 : vector<1x128xf32> to vector<128x128xf32>
    %15 = arith.mulf %12, %14 : vector<128x128xf32>
    %cst_12 = arith.constant dense<0.000000e+00> : vector<128xf32>
    %16 = vector.multi_reduction <add>, %15, %cst_12 [1] : vector<128x128xf32> to vector<128xf32>
    %c0_13 = arith.constant 0 : index
    %c0_14 = arith.constant 0 : index
    %17 = memref.load %arg7[%c0_13, %c0_14] : memref<1x1xf32, #tpu.memory_space<smem>>
    %18 = vector.broadcast %17 : f32 to vector<128xf32>
    %19 = arith.addf %16, %18 : vector<128xf32>
    %20 = vector.shape_cast %19 : vector<128xf32> to vector<1x1x128xf32>
    %c0_15 = arith.constant 0 : index
    %c0_16 = arith.constant 0 : index
    %c0_17 = arith.constant 0 : index
    %21 = vector.load %arg8[%c0_15, %c0_16, %c0_17] : memref<1x1x128xf32, #tpu.memory_space<vmem>>, vector<1x1x128xf32>
    tpu.vector_store %arg8[%c0_15, %c0_16, %c0_17], %20 {strides = array<i32>} : memref<1x1x128xf32, #tpu.memory_space<vmem>>, vector<1x1x128xf32>,
    return
  }
  func.func @transform_0(%arg0: i32) -> (i32, i32) {
    %c0_i32 = arith.constant 0 : i32
    %c0_i32_0 = arith.constant 0 : i32
    return %arg0, %c0_i32 : i32, i32
  }
  func.func @transform_1(%arg0: i32) -> (i32, i32) {
    %c0_i32 = arith.constant 0 : i32
    %c0_i32_0 = arith.constant 0 : i32
    %c0_i32_1 = arith.constant 0 : i32
    return %c0_i32, %c0_i32_0 : i32, i32
  }
  func.func @transform_2(%arg0: i32) -> (i32, i32) {
    %c0_i32 = arith.constant 0 : i32
    %c0_i32_0 = arith.constant 0 : i32
    %c0_i32_1 = arith.constant 0 : i32
    return %c0_i32, %c0_i32_0 : i32, i32
  }
  func.func @transform_3(%arg0: i32) -> (i32, i32) {
    %c0_i32 = arith.constant 0 : i32
    %c0_i32_0 = arith.constant 0 : i32
    %c0_i32_1 = arith.constant 0 : i32
    return %c0_i32, %c0_i32_0 : i32, i32
  }
  func.func @transform_4(%arg0: i32) -> (i32, i32) {
    %c0_i32 = arith.constant 0 : i32
    %c0_i32_0 = arith.constant 0 : i32
    %c0_i32_1 = arith.constant 0 : i32
    return %c0_i32, %c0_i32_0 : i32, i32
  }
  func.func @transform_5(%arg0: i32) -> (i32, i32) {
    %c0_i32 = arith.constant 0 : i32
    %c0_i32_0 = arith.constant 0 : i32
    %c0_i32_1 = arith.constant 0 : i32
    return %c0_i32, %c0_i32_0 : i32, i32
  }
  func.func @transform_6(%arg0: i32) -> (i32, i32) {
    %c0_i32 = arith.constant 0 : i32
    %c0_i32_0 = arith.constant 0 : i32
    %c0_i32_1 = arith.constant 0 : i32
    return %c0_i32, %c0_i32_0 : i32, i32
  }
  func.func @transform_7(%arg0: i32) -> (i32, i32, i32) {
    %c0_i32 = arith.constant 0 : i32
    %c0_i32_0 = arith.constant 0 : i32
    %c0_i32_1 = arith.constant 0 : i32
    return %arg0, %c0_i32, %c0_i32_0 : i32, i32, i32
  }
}

</mosaic_0001>

<llo_original>
// kernel: tpu_custom_call.1
$region0: #{tpu_custom_call.1}
  #allocation0 [shape = 'u32[]', space=smem, size = 0x4, offset = 0x4, fixed_abs, tag = 'smem constant byte address 0x4 - core index']
  #allocation1 [shape = 'u32[144,128]{1,0:T(1,128)}', space=vmem, size = 0x12000, scoped, tag = 'internal scratch']
  #allocation2 [shape = 'f32[1,1]{1,0:T(1,128)S(6)}', space=smem, size = 0x200, scoped, tag = 'scoped memory for tpu_custom_call.1']
  %s0 = inlined_call_operand.vmem [shape: f32[128,4], index: 0, kind: input, shape index: {}]
  %s1 = inlined_call_operand.vmem [shape: f32[4,128], index: 1, kind: input, shape index: {}]
  %s2 = inlined_call_operand.vmem [shape: f32[1,128], index: 2, kind: input, shape index: {}]
  %s3 = inlined_call_operand.vmem [shape: f32[128,128], index: 3, kind: input, shape index: {}]
  %s4 = inlined_call_operand.vmem [shape: f32[1,128], index: 4, kind: input, shape index: {}]
  %s5 = inlined_call_operand.vmem [shape: f32[1,128], index: 5, kind: input, shape index: {}]
  %s6 = inlined_call_operand.<no memory space> [shape: f32[1,1], index: 6, kind: input, shape index: {}]
  %s7 = inlined_call_operand.hbm [shape: f32[1,1,128], index: 7, kind: output, shape index: {}]
  %s8 = sld [smem:[#allocation0]]
  $region38: #{tpu_custom_call.1} parent=0
    _
  %s10 = ssub.s32 1, %s8
  %s11 = scalar_select 0, %s10, %s8
  %12 = sst [smem:[#allocation2]] %s6
  $region1: #{tpu_custom_call.1} parent=0
    #allocation3 [shape = 'u8[512]{0}', space=vmem, size = 0x400, scoped, tag = 'output window, operand 0, single buffered']
    #allocation4 [shape = 's32[1]{0}', space=sflag, size = 0x4, scoped, tag = 'scoped memory for tpu_custom_call.1']
    %13 = vsyncpa [#allocation4], 0
    // Predicated region
    $region2: #{tpu_custom_call.1} parent=1 // pred_check
      _
    $region3: #{tpu_custom_call.1} parent=1 // pred_check_branch
      %15 = sbr.rel (0) target = $region5
    $region4: #{tpu_custom_call.1} parent=1 // pred_region
      _
    $region5: #{tpu_custom_call.1} parent=1 // pred_fallthru
      _
    // Predicated region
    $region6: #{tpu_custom_call.1} parent=1 // pred_check
      _
    $region7: #{tpu_custom_call.1} parent=1 // pred_check_branch
      %17 = sbr.rel (0) target = $region9
    $region8: #{tpu_custom_call.1} parent=1 // pred_region
      _
    $region9: #{tpu_custom_call.1} parent=1 // pred_fallthru
      _
    // Predicated region
    $region10: #{tpu_custom_call.1} parent=1 // pred_check
      _
    $region11: #{tpu_custom_call.1} parent=1 // pred_check_branch
      %19 = sbr.rel (0) target = $region13
    $region12: #{tpu_custom_call.1} parent=1 // pred_region
      _
    $region13: #{tpu_custom_call.1} parent=1 // pred_fallthru
      _
    // Predicated region
    $region14: #{tpu_custom_call.1} parent=1 // pred_check
      _
    $region15: #{tpu_custom_call.1} parent=1 // pred_check_branch
      %21 = sbr.rel (0) target = $region17
    $region16: #{tpu_custom_call.1} parent=1 // pred_region
      _
    $region17: #{tpu_custom_call.1} parent=1 // pred_fallthru
      _
    // Predicated region
    $region18: #{tpu_custom_call.1} parent=1 // pred_check
      _
    $region19: #{tpu_custom_call.1} parent=1 // pred_check_branch
      %23 = sbr.rel (0) target = $region21
    $region20: #{tpu_custom_call.1} parent=1 // pred_region
      _
    $region21: #{tpu_custom_call.1} parent=1 // pred_fallthru
      _
    // Predicated region
    $region22: #{tpu_custom_call.1} parent=1 // pred_check
      _
    $region23: #{tpu_custom_call.1} parent=1 // pred_check_branch
      %25 = sbr.rel (0) target = $region25
    $region24: #{tpu_custom_call.1} parent=1 // pred_region
      _
    $region25: #{tpu_custom_call.1} parent=1 // pred_fallthru
      _
    // Predicated region
    $region26: #{tpu_custom_call.1} parent=1 // pred_check
      _
    $region27: #{tpu_custom_call.1} parent=1 // pred_check_branch
      %27 = sbr.rel (0) target = $region29
    $region28: #{tpu_custom_call.1} parent=1 // pred_region
      _
    $region29: #{tpu_custom_call.1} parent=1 // pred_fallthru
      _
    %v28 = vld [vmem:[%s0] sm:$0xff]
    %v29 = vld [vmem:[%s0 + $0x8] sm:$0xff]
    %v30 = vld [vmem:[%s0 + $0x10] sm:$0xff]
    %v31 = vld [vmem:[%s0 + $0x18] sm:$0xff]
    %v32 = vld [vmem:[%s0 + $0x20] sm:$0xff]
    %v33 = vld [vmem:[%s0 + $0x28] sm:$0xff]
    %v34 = vld [vmem:[%s0 + $0x30] sm:$0xff]
    %v35 = vld [vmem:[%s0 + $0x38] sm:$0xff]
    %v36 = vld [vmem:[%s0 + $0x40] sm:$0xff]
    %v37 = vld [vmem:[%s0 + $0x48] sm:$0xff]
    %v38 = vld [vmem:[%s0 + $0x50] sm:$0xff]
    %v39 = vld [vmem:[%s0 + $0x58] sm:$0xff]
    %v40 = vld [vmem:[%s0 + $0x60] sm:$0xff]
    %v41 = vld [vmem:[%s0 + $0x68] sm:$0xff]
    %v42 = vld [vmem:[%s0 + $0x70] sm:$0xff]
    %v43 = vld [vmem:[%s0 + $0x78] sm:$0xff]
    %v44 = vld [vmem:[%s1] sm:$0xf]
    %v45 = vld [vmem:[%s2] sm:$0x1]
    %v47 = vlaneseq
    %v48 = vshrl.u32 %v47, 7
    %v49 = vsub.s32 0, %v48
    %v50 = vrot.slane %v45, %v49
    %vm52 = vcmask 31744
    %v54 = vsel %vm52, %v28, 0
    %v57 = vsel %vm52, %v29, 0
    %v60 = vsel %vm52, %v30, 0
    %v63 = vsel %vm52, %v31, 0
    %v66 = vsel %vm52, %v32, 0
    %v69 = vsel %vm52, %v33, 0
    %v72 = vsel %vm52, %v34, 0
    %v75 = vsel %vm52, %v35, 0
    %v78 = vsel %vm52, %v36, 0
    %v81 = vsel %vm52, %v37, 0
    %v84 = vsel %vm52, %v38, 0
    %v87 = vsel %vm52, %v39, 0
    %v90 = vsel %vm52, %v40, 0
    %v93 = vsel %vm52, %v41, 0
    %v96 = vsel %vm52, %v42, 0
    %v99 = vsel %vm52, %v43, 0
    %vm101 = vcmask 1043456
    %v103 = vsel %vm101, %v44, 0
    %105 = vmatprep.subr.mxu0 0.0
    %106 = vmatpush1.msra.mxu0 0.0
    %107 = vmatprep.subr.mxu0 0.0
    %108 = vmatpush1.msra.mxu0 0.0
    %109 = vmatprep.subr.mxu0 0.0
    %110 = vmatpush1.msra.mxu0 0.0
    %111 = vmatprep.subr.mxu0 0.0
    %112 = vmatpush1.msra.mxu0 0.0
    %113 = vmatprep.subr.mxu0 0.0
    %114 = vmatpush1.msra.mxu0 0.0
    %115 = vmatprep.subr.mxu0 0.0
    %116 = vmatpush1.msra.mxu0 0.0
    %117 = vmatprep.subr.mxu0 0.0
    %118 = vmatpush1.msra.mxu0 0.0
    %119 = vmatprep.subr.mxu0 0.0
    %120 = vmatpush1.msra.mxu0 0.0
    %121 = vmatprep.subr.mxu0 0.0
    %122 = vmatpush1.msra.mxu0 0.0
    %123 = vmatprep.subr.mxu0 0.0
    %124 = vmatpush1.msra.mxu0 0.0
    %125 = vmatprep.subr.mxu0 0.0
    %126 = vmatpush1.msra.mxu0 0.0
    %127 = vmatprep.subr.mxu0 0.0
    %128 = vmatpush1.msra.mxu0 0.0
    %129 = vmatprep.subr.mxu0 0.0
    %130 = vmatpush1.msra.mxu0 0.0
    %131 = vmatprep.subr.mxu0 0.0
    %132 = vmatpush1.msra.mxu0 0.0
    %133 = vmatprep.subr.mxu0 0.0
    %134 = vmatpush1.msra.mxu0 0.0
    %135 = vmatprep.subr.mxu0 0.0
    %136 = vmatpush1.msra.mxu0 %v103
    %137 = vmatprep.subr.mxu0 0.0
    %138 = vmatpush2.msra.mxu0 0.0
    %139 = vmatprep.subr.mxu0 0.0
    %140 = vmatpush2.msra.mxu0 0.0
    %141 = vmatprep.subr.mxu0 0.0
    %142 = vmatpush2.msra.mxu0 0.0
    %143 = vmatprep.subr.mxu0 0.0
    %144 = vmatpush2.msra.mxu0 0.0
    %145 = vmatprep.subr.mxu0 0.0
    %146 = vmatpush2.msra.mxu0 0.0
    %147 = vmatprep.subr.mxu0 0.0
    %148 = vmatpush2.msra.mxu0 0.0
    %149 = vmatprep.subr.mxu0 0.0
    %150 = vmatpush2.msra.mxu0 0.0
    %151 = vmatprep.subr.mxu0 0.0
    %152 = vmatpush2.msra.mxu0 0.0
    %153 = vmatprep.subr.mxu0 0.0
    %154 = vmatpush2.msra.mxu0 0.0
    %155 = vmatprep.subr.mxu0 0.0
    %156 = vmatpush2.msra.mxu0 0.0
    %157 = vmatprep.subr.mxu0 0.0
    %158 = vmatpush2.msra.mxu0 0.0
    %159 = vmatprep.subr.mxu0 0.0
    %160 = vmatpush2.msra.mxu0 0.0
    %161 = vmatprep.subr.mxu0 0.0
    %162 = vmatpush2.msra.mxu0 0.0
    %163 = vmatprep.subr.mxu0 0.0
    %164 = vmatpush2.msra.mxu0 0.0
    %165 = vmatprep.subr.mxu0 0.0
    %166 = vmatpush2.msra.mxu0 0.0
    %167 = vmatprep.subr.mxu0 0.0
    %168 = vmatpush2.msra.mxu0 0.0
    %169 = vmatprep.mubr.f32.mxu0 0.0
    %170 = vmatmul.mubr.f32.gmra.mxu0 %v54
    %v171 = vpop.f32.mrf.mxu0
    %v172 = vadd.f32 %v50, %v171
    %v173 = vpop.f32.mrf.mxu0
    %174 = vmatprep.mubr.f32.mxu0 0.0
    %175 = vmatmul.mubr.f32.gmra.mxu0 %v57
    %v176 = vpop.f32.mrf.mxu0
    %v177 = vadd.f32 %v50, %v176
    %v178 = vpop.f32.mrf.mxu0
    %179 = vmatprep.mubr.f32.mxu0 0.0
    %180 = vmatmul.mubr.f32.gmra.mxu0 %v60
    %v181 = vpop.f32.mrf.mxu0
    %v182 = vadd.f32 %v50, %v181
    %v183 = vpop.f32.mrf.mxu0
    %184 = vmatprep.mubr.f32.mxu0 0.0
    %185 = vmatmul.mubr.f32.gmra.mxu0 %v63
    %v186 = vpop.f32.mrf.mxu0
    %v187 = vadd.f32 %v50, %v186
    %v188 = vpop.f32.mrf.mxu0
    %189 = vmatprep.mubr.f32.mxu0 0.0
    %190 = vmatmul.mubr.f32.gmra.mxu0 %v66
    %v191 = vpop.f32.mrf.mxu0
    %v192 = vadd.f32 %v50, %v191
    %v193 = vpop.f32.mrf.mxu0
    %194 = vmatprep.mubr.f32.mxu0 0.0
    %195 = vmatmul.mubr.f32.gmra.mxu0 %v69
    %v196 = vpop.f32.mrf.mxu0
    %v197 = vadd.f32 %v50, %v196
    %v198 = vpop.f32.mrf.mxu0
    %199 = vmatprep.mubr.f32.mxu0 0.0
    %200 = vmatmul.mubr.f32.gmra.mxu0 %v72
    %v201 = vpop.f32.mrf.mxu0
    %v202 = vadd.f32 %v50, %v201
    %v203 = vpop.f32.mrf.mxu0
    %204 = vmatprep.mubr.f32.mxu0 0.0
    %205 = vmatmul.mubr.f32.gmra.mxu0 %v75
    %v206 = vpop.f32.mrf.mxu0
    %v207 = vadd.f32 %v50, %v206
    %v208 = vpop.f32.mrf.mxu0
    %209 = vmatprep.mubr.f32.mxu0 0.0
    %210 = vmatmul.mubr.f32.gmra.mxu0 %v78
    %v211 = vpop.f32.mrf.mxu0
    %v212 = vadd.f32 %v50, %v211
    %v213 = vpop.f32.mrf.mxu0
    %214 = vmatprep.mubr.f32.mxu0 0.0
    %215 = vmatmul.mubr.f32.gmra.mxu0 %v81
    %v216 = vpop.f32.mrf.mxu0
    %v217 = vadd.f32 %v50, %v216
    %v218 = vpop.f32.mrf.mxu0
    %219 = vmatprep.mubr.f32.mxu0 0.0
    %220 = vmatmul.mubr.f32.gmra.mxu0 %v84
    %v221 = vpop.f32.mrf.mxu0
    %v222 = vadd.f32 %v50, %v221
    %v223 = vpop.f32.mrf.mxu0
    %224 = vmatprep.mubr.f32.mxu0 0.0
    %225 = vmatmul.mubr.f32.gmra.mxu0 %v87
    %v226 = vpop.f32.mrf.mxu0
    %v227 = vadd.f32 %v50, %v226
    %v228 = vpop.f32.mrf.mxu0
    %229 = vmatprep.mubr.f32.mxu0 0.0
    %230 = vmatmul.mubr.f32.gmra.mxu0 %v90
    %v231 = vpop.f32.mrf.mxu0
    %v232 = vadd.f32 %v50, %v231
    %v233 = vpop.f32.mrf.mxu0
    %234 = vmatprep.mubr.f32.mxu0 0.0
    %235 = vmatmul.mubr.f32.gmra.mxu0 %v93
    %v236 = vpop.f32.mrf.mxu0
    %v237 = vadd.f32 %v50, %v236
    %v238 = vpop.f32.mrf.mxu0
    %239 = vmatprep.mubr.f32.mxu0 0.0
    %240 = vmatmul.mubr.f32.gmra.mxu0 %v96
    %v241 = vpop.f32.mrf.mxu0
    %v242 = vadd.f32 %v50, %v241
    %v243 = vpop.f32.mrf.mxu0
    %244 = vmatprep.mubr.f32.mxu0 0.0
    %245 = vmatmul.mubr.f32.gmra.mxu0 %v99
    %v246 = vpop.f32.mrf.mxu0
    %v247 = vadd.f32 %v50, %v246
    %v248 = vpop.f32.mrf.mxu0
    %249 = vdwg.mxu0
    %v250 = vtanh.pop %v172
    %v251 = vtanh.pop %v177
    %v252 = vtanh.pop %v182
    %v253 = vtanh.pop %v187
    %v254 = vtanh.pop %v192
    %v255 = vtanh.pop %v197
    %v256 = vtanh.pop %v202
    %v257 = vtanh.pop %v207
    %v258 = vtanh.pop %v212
    %v259 = vtanh.pop %v217
    %v260 = vtanh.pop %v222
    %v261 = vtanh.pop %v227
    %v262 = vtanh.pop %v232
    %v263 = vtanh.pop %v237
    %v264 = vtanh.pop %v242
    %v265 = vtanh.pop %v247
    %v266 = vld [vmem:[%s3] sm:$0xff]
    %v267 = vld [vmem:[%s3 + $0x8] sm:$0xff]
    %v268 = vld [vmem:[%s3 + $0x10] sm:$0xff]
    %v269 = vld [vmem:[%s3 + $0x18] sm:$0xff]
    %v270 = vld [vmem:[%s3 + $0x20] sm:$0xff]
    %v271 = vld [vmem:[%s3 + $0x28] sm:$0xff]
    %v272 = vld [vmem:[%s3 + $0x30] sm:$0xff]
    %v273 = vld [vmem:[%s3 + $0x38] sm:$0xff]
    %v274 = vld [vmem:[%s3 + $0x40] sm:$0xff]
    %v275 = vld [vmem:[%s3 + $0x48] sm:$0xff]
    %v276 = vld [vmem:[%s3 + $0x50] sm:$0xff]
    %v277 = vld [vmem:[%s3 + $0x58] sm:$0xff]
    %v278 = vld [vmem:[%s3 + $0x60] sm:$0xff]
    %v279 = vld [vmem:[%s3 + $0x68] sm:$0xff]
    %v280 = vld [vmem:[%s3 + $0x70] sm:$0xff]
    %v281 = vld [vmem:[%s3 + $0x78] sm:$0xff]
    %v282 = vld [vmem:[%s4] sm:$0x1]
    %v284 = vlaneseq
    %v285 = vshrl.u32 %v284, 7
    %v286 = vsub.s32 0, %v285
    %v287 = vrot.slane %v282, %v286
    %289 = vmatprep.subr.mxu0 0.0
    %290 = vmatpush1.msra.mxu0 %v281
    %291 = vmatprep.subr.mxu0 0.0
    %292 = vmatpush1.msra.mxu0 %v280
    %293 = vmatprep.subr.mxu0 0.0
    %294 = vmatpush1.msra.mxu0 %v279
    %295 = vmatprep.subr.mxu0 0.0
    %296 = vmatpush1.msra.mxu0 %v278
    %297 = vmatprep.subr.mxu0 0.0
    %298 = vmatpush1.msra.mxu0 %v277
    %299 = vmatprep.subr.mxu0 0.0
    %300 = vmatpush1.msra.mxu0 %v276
    %301 = vmatprep.subr.mxu0 0.0
    %302 = vmatpush1.msra.mxu0 %v275
    %303 = vmatprep.subr.mxu0 0.0
    %304 = vmatpush1.msra.mxu0 %v274
    %305 = vmatprep.subr.mxu0 0.0
    %306 = vmatpush1.msra.mxu0 %v273
    %307 = vmatprep.subr.mxu0 0.0
    %308 = vmatpush1.msra.mxu0 %v272
    %309 = vmatprep.subr.mxu0 0.0
    %310 = vmatpush1.msra.mxu0 %v271
    %311 = vmatprep.subr.mxu0 0.0
    %312 = vmatpush1.msra.mxu0 %v270
    %313 = vmatprep.subr.mxu0 0.0
    %314 = vmatpush1.msra.mxu0 %v269
    %315 = vmatprep.subr.mxu0 0.0
    %316 = vmatpush1.msra.mxu0 %v268
    %317 = vmatprep.subr.mxu0 0.0
    %318 = vmatpush1.msra.mxu0 %v267
    %319 = vmatprep.subr.mxu0 0.0
    %320 = vmatpush1.msra.mxu0 %v266
    %321 = vmatprep.subr.mxu0 0.0
    %322 = vmatpush2.msra.mxu0 0.0
    %323 = vmatprep.subr.mxu0 0.0
    %324 = vmatpush2.msra.mxu0 0.0
    %325 = vmatprep.subr.mxu0 0.0
    %326 = vmatpush2.msra.mxu0 0.0
    %327 = vmatprep.subr.mxu0 0.0
    %328 = vmatpush2.msra.mxu0 0.0
    %329 = vmatprep.subr.mxu0 0.0
    %330 = vmatpush2.msra.mxu0 0.0
    %331 = vmatprep.subr.mxu0 0.0
    %332 = vmatpush2.msra.mxu0 0.0
    %333 = vmatprep.subr.mxu0 0.0
    %334 = vmatpush2.msra.mxu0 0.0
    %335 = vmatprep.subr.mxu0 0.0
    %336 = vmatpush2.msra.mxu0 0.0
    %337 = vmatprep.subr.mxu0 0.0
    %338 = vmatpush2.msra.mxu0 0.0
    %339 = vmatprep.subr.mxu0 0.0
    %340 = vmatpush2.msra.mxu0 0.0
    %341 = vmatprep.subr.mxu0 0.0
    %342 = vmatpush2.msra.mxu0 0.0
    %343 = vmatprep.subr.mxu0 0.0
    %344 = vmatpush2.msra.mxu0 0.0
    %345 = vmatprep.subr.mxu0 0.0
    %346 = vmatpush2.msra.mxu0 0.0
    %347 = vmatprep.subr.mxu0 0.0
    %348 = vmatpush2.msra.mxu0 0.0
    %349 = vmatprep.subr.mxu0 0.0
    %350 = vmatpush2.msra.mxu0 0.0
    %351 = vmatprep.subr.mxu0 0.0
    %352 = vmatpush2.msra.mxu0 0.0
    %353 = vmatprep.mubr.f32.mxu0 0.0
    %354 = vmatmul.mubr.f32.gmra.mxu0 %v250
    %v355 = vpop.f32.mrf.mxu0
    %v356 = vadd.f32 %v287, %v355
    %v357 = vpop.f32.mrf.mxu0
    %358 = vmatprep.mubr.f32.mxu0 0.0
    %359 = vmatmul.mubr.f32.gmra.mxu0 %v251
    %v360 = vpop.f32.mrf.mxu0
    %v361 = vadd.f32 %v287, %v360
    %v362 = vpop.f32.mrf.mxu0
    %363 = vmatprep.mubr.f32.mxu0 0.0
    %364 = vmatmul.mubr.f32.gmra.mxu0 %v252
    %v365 = vpop.f32.mrf.mxu0
    %v366 = vadd.f32 %v287, %v365
    %v367 = vpop.f32.mrf.mxu0
    %368 = vmatprep.mubr.f32.mxu0 0.0
    %369 = vmatmul.mubr.f32.gmra.mxu0 %v253
    %v370 = vpop.f32.mrf.mxu0
    %v371 = vadd.f32 %v287, %v370
    %v372 = vpop.f32.mrf.mxu0
    %373 = vmatprep.mubr.f32.mxu0 0.0
    %374 = vmatmul.mubr.f32.gmra.mxu0 %v254
    %v375 = vpop.f32.mrf.mxu0
    %v376 = vadd.f32 %v287, %v375
    %v377 = vpop.f32.mrf.mxu0
    %378 = vmatprep.mubr.f32.mxu0 0.0
    %379 = vmatmul.mubr.f32.gmra.mxu0 %v255
    %v380 = vpop.f32.mrf.mxu0
    %v381 = vadd.f32 %v287, %v380
    %v382 = vpop.f32.mrf.mxu0
    %383 = vmatprep.mubr.f32.mxu0 0.0
    %384 = vmatmul.mubr.f32.gmra.mxu0 %v256
    %v385 = vpop.f32.mrf.mxu0
    %v386 = vadd.f32 %v287, %v385
    %v387 = vpop.f32.mrf.mxu0
    %388 = vmatprep.mubr.f32.mxu0 0.0
    %389 = vmatmul.mubr.f32.gmra.mxu0 %v257
    %v390 = vpop.f32.mrf.mxu0
    %v391 = vadd.f32 %v287, %v390
    %v392 = vpop.f32.mrf.mxu0
    %393 = vmatprep.mubr.f32.mxu0 0.0
    %394 = vmatmul.mubr.f32.gmra.mxu0 %v258
    %v395 = vpop.f32.mrf.mxu0
    %v396 = vadd.f32 %v287, %v395
    %v397 = vpop.f32.mrf.mxu0
    %398 = vmatprep.mubr.f32.mxu0 0.0
    %399 = vmatmul.mubr.f32.gmra.mxu0 %v259
    %v400 = vpop.f32.mrf.mxu0
    %v401 = vadd.f32 %v287, %v400
    %v402 = vpop.f32.mrf.mxu0
    %403 = vmatprep.mubr.f32.mxu0 0.0
    %404 = vmatmul.mubr.f32.gmra.mxu0 %v260
    %v405 = vpop.f32.mrf.mxu0
    %v406 = vadd.f32 %v287, %v405
    %v407 = vpop.f32.mrf.mxu0
    %408 = vmatprep.mubr.f32.mxu0 0.0
    %409 = vmatmul.mubr.f32.gmra.mxu0 %v261
    %v410 = vpop.f32.mrf.mxu0
    %v411 = vadd.f32 %v287, %v410
    %v412 = vpop.f32.mrf.mxu0
    %413 = vmatprep.mubr.f32.mxu0 0.0
    %414 = vmatmul.mubr.f32.gmra.mxu0 %v262
    %v415 = vpop.f32.mrf.mxu0
    %v416 = vadd.f32 %v287, %v415
    %v417 = vpop.f32.mrf.mxu0
    %418 = vmatprep.mubr.f32.mxu0 0.0
    %419 = vmatmul.mubr.f32.gmra.mxu0 %v263
    %v420 = vpop.f32.mrf.mxu0
    %v421 = vadd.f32 %v287, %v420
    %v422 = vpop.f32.mrf.mxu0
    %423 = vmatprep.mubr.f32.mxu0 0.0
    %424 = vmatmul.mubr.f32.gmra.mxu0 %v264
    %v425 = vpop.f32.mrf.mxu0
    %v426 = vadd.f32 %v287, %v425
    %v427 = vpop.f32.mrf.mxu0
    %428 = vmatprep.mubr.f32.mxu0 0.0
    %429 = vmatmul.mubr.f32.gmra.mxu0 %v265
    %v430 = vpop.f32.mrf.mxu0
    %v431 = vadd.f32 %v287, %v430
    %v432 = vpop.f32.mrf.mxu0
    %433 = vdwg.mxu0
    %v434 = vtanh.pop %v356
    %v435 = vtanh.pop %v361
    %v436 = vtanh.pop %v366
    %v437 = vtanh.pop %v371
    %v438 = vtanh.pop %v376
    %v439 = vtanh.pop %v381
    %v440 = vtanh.pop %v386
    %v441 = vtanh.pop %v391
    %v442 = vtanh.pop %v396
    %v443 = vtanh.pop %v401
    %v444 = vtanh.pop %v406
    %v445 = vtanh.pop %v411
    %v446 = vtanh.pop %v416
    %v447 = vtanh.pop %v421
    %v448 = vtanh.pop %v426
    %v449 = vtanh.pop %v431
    %v450 = vld [vmem:[%s5] sm:$0x1]
    %v452 = vlaneseq
    %v453 = vshrl.u32 %v452, 7
    %v454 = vsub.s32 0, %v453
    %v455 = vrot.slane %v450, %v454
    %v457 = vmul.f32 %v434, %v455
    %v458 = vmul.f32 %v435, %v455
    %v459 = vmul.f32 %v436, %v455
    %v460 = vmul.f32 %v437, %v455
    %v461 = vmul.f32 %v438, %v455
    %v462 = vmul.f32 %v439, %v455
    %v463 = vmul.f32 %v440, %v455
    %v464 = vmul.f32 %v441, %v455
    %v465 = vmul.f32 %v442, %v455
    %v466 = vmul.f32 %v443, %v455
    %v467 = vmul.f32 %v444, %v455
    %v468 = vmul.f32 %v445, %v455
    %v469 = vmul.f32 %v446, %v455
    %v470 = vmul.f32 %v447, %v455
    %v471 = vmul.f32 %v448, %v455
    %v472 = vmul.f32 %v449, %v455
    %473 = vadd.xlane.f32.xlu0 %v457
    %v474 = vpop.xlane.xlu0 %473
    %475 = vadd.xlane.f32.xlu0 %v458
    %v476 = vpop.xlane.xlu0 %475
    %477 = vadd.xlane.f32.xlu0 %v459
    %v478 = vpop.xlane.xlu0 %477
    %479 = vadd.xlane.f32.xlu0 %v460
    %v480 = vpop.xlane.xlu0 %479
    %481 = vadd.xlane.f32.xlu0 %v461
    %v482 = vpop.xlane.xlu0 %481
    %483 = vadd.xlane.f32.xlu0 %v462
    %v484 = vpop.xlane.xlu0 %483
    %485 = vadd.xlane.f32.xlu0 %v463
    %v486 = vpop.xlane.xlu0 %485
    %487 = vadd.xlane.f32.xlu0 %v464
    %v488 = vpop.xlane.xlu0 %487
    %489 = vadd.xlane.f32.xlu0 %v465
    %v490 = vpop.xlane.xlu0 %489
    %491 = vadd.xlane.f32.xlu0 %v466
    %v492 = vpop.xlane.xlu0 %491
    %493 = vadd.xlane.f32.xlu0 %v467
    %v494 = vpop.xlane.xlu0 %493
    %495 = vadd.xlane.f32.xlu0 %v468
    %v496 = vpop.xlane.xlu0 %495
    %497 = vadd.xlane.f32.xlu0 %v469
    %v498 = vpop.xlane.xlu0 %497
    %499 = vadd.xlane.f32.xlu0 %v470
    %v500 = vpop.xlane.xlu0 %499
    %501 = vadd.xlane.f32.xlu0 %v471
    %v502 = vpop.xlane.xlu0 %501
    %503 = vadd.xlane.f32.xlu0 %v472
    %v504 = vpop.xlane.xlu0 %503
    %s505 = sld [smem:[#allocation2]]
    %v506 = vstv %s505
    %v507 = vadd.f32 %v474, %v506
    %v508 = vadd.f32 %v476, %v506
    %v509 = vadd.f32 %v478, %v506
    %v510 = vadd.f32 %v480, %v506
    %v511 = vadd.f32 %v482, %v506
    %v512 = vadd.f32 %v484, %v506
    %v513 = vadd.f32 %v486, %v506
    %v514 = vadd.f32 %v488, %v506
    %v515 = vadd.f32 %v490, %v506
    %v516 = vadd.f32 %v492, %v506
    %v517 = vadd.f32 %v494, %v506
    %v518 = vadd.f32 %v496, %v506
    %v519 = vadd.f32 %v498, %v506
    %v520 = vadd.f32 %v500, %v506
    %v521 = vadd.f32 %v502, %v506
    %v522 = vadd.f32 %v504, %v506
    %v539 = vlaneseq
    %v540 = vand.u32 %v539, 127
    %v541 = vlaneseq
    %v542 = vshrl.u32 %v541, 7
    %v543 = vsub.s32 %v540, %v542
    %v544 = vrot.slane %v507, %v543
    %v545 = vadd.s32 %v540, 4294967288
    %v546 = vlaneseq
    %v547 = vshrl.u32 %v546, 7
    %v548 = vsub.s32 %v545, %v547
    %v549 = vrot.slane %v508, %v548
    %vm550 = vcmask 130112
    %v551 = vsel %vm550, %v549, %v544
    %v552 = vadd.s32 %v540, 4294967280
    %v553 = vlaneseq
    %v554 = vshrl.u32 %v553, 7
    %v555 = vsub.s32 %v552, %v554
    %v556 = vrot.slane %v509, %v555
    %vm557 = vcmask 195712
    %v558 = vsel %vm557, %v556, %v551
    %v559 = vadd.s32 %v540, 4294967272
    %v560 = vlaneseq
    %v561 = vshrl.u32 %v560, 7
    %v562 = vsub.s32 %v559, %v561
    %v563 = vrot.slane %v510, %v562
    %vm564 = vcmask 261312
    %v565 = vsel %vm564, %v563, %v558
    %v566 = vadd.s32 %v540, 4294967264
    %v567 = vlaneseq
    %v568 = vshrl.u32 %v567, 7
    %v569 = vsub.s32 %v566, %v568
    %v570 = vrot.slane %v511, %v569
    %vm571 = vcmask 326912
    %v572 = vsel %vm571, %v570, %v565
    %v573 = vadd.s32 %v540, 4294967256
    %v574 = vlaneseq
    %v575 = vshrl.u32 %v574, 7
    %v576 = vsub.s32 %v573, %v575
    %v577 = vrot.slane %v512, %v576
    %vm578 = vcmask 392512
    %v579 = vsel %vm578, %v577, %v572
    %v580 = vadd.s32 %v540, 4294967248
    %v581 = vlaneseq
    %v582 = vshrl.u32 %v581, 7
    %v583 = vsub.s32 %v580, %v582
    %v584 = vrot.slane %v513, %v583
    %vm585 = vcmask 458112
    %v586 = vsel %vm585, %v584, %v579
    %v587 = vadd.s32 %v540, 4294967240
    %v588 = vlaneseq
    %v589 = vshrl.u32 %v588, 7
    %v590 = vsub.s32 %v587, %v589
    %v591 = vrot.slane %v514, %v590
    %vm592 = vcmask 523712
    %v593 = vsel %vm592, %v591, %v586
    %v594 = vadd.s32 %v540, 4294967232
    %v595 = vlaneseq
    %v596 = vshrl.u32 %v595, 7
    %v597 = vsub.s32 %v594, %v596
    %v598 = vrot.slane %v515, %v597
    %vm599 = vcmask 589312
    %v600 = vsel %vm599, %v598, %v593
    %v601 = vadd.s32 %v540, 4294967224
    %v602 = vlaneseq
    %v603 = vshrl.u32 %v602, 7
    %v604 = vsub.s32 %v601, %v603
    %v605 = vrot.slane %v516, %v604
    %vm606 = vcmask 654912
    %v607 = vsel %vm606, %v605, %v600
    %v608 = vadd.s32 %v540, 4294967216
    %v609 = vlaneseq
    %v610 = vshrl.u32 %v609, 7
    %v611 = vsub.s32 %v608, %v610
    %v612 = vrot.slane %v517, %v611
    %vm613 = vcmask 720512
    %v614 = vsel %vm613, %v612, %v607
    %v615 = vadd.s32 %v540, 4294967208
    %v616 = vlaneseq
    %v617 = vshrl.u32 %v616, 7
    %v618 = vsub.s32 %v615, %v617
    %v619 = vrot.slane %v518, %v618
    %vm620 = vcmask 786112
    %v621 = vsel %vm620, %v619, %v614
    %v622 = vadd.s32 %v540, 4294967200
    %v623 = vlaneseq
    %v624 = vshrl.u32 %v623, 7
    %v625 = vsub.s32 %v622, %v624
    %v626 = vrot.slane %v519, %v625
    %vm627 = vcmask 851712
    %v628 = vsel %vm627, %v626, %v621
    %v629 = vadd.s32 %v540, 4294967192
    %v630 = vlaneseq
    %v631 = vshrl.u32 %v630, 7
    %v632 = vsub.s32 %v629, %v631
    %v633 = vrot.slane %v520, %v632
    %vm634 = vcmask 917312
    %v635 = vsel %vm634, %v633, %v628
    %v636 = vadd.s32 %v540, 4294967184
    %v637 = vlaneseq
    %v638 = vshrl.u32 %v637, 7
    %v639 = vsub.s32 %v636, %v638
    %v640 = vrot.slane %v521, %v639
    %vm641 = vcmask 982912
    %v642 = vsel %vm641, %v640, %v635
    %v643 = vadd.s32 %v540, 4294967176
    %v644 = vlaneseq
    %v645 = vshrl.u32 %v644, 7
    %v646 = vsub.s32 %v643, %v645
    %v647 = vrot.slane %v522, %v646
    %vm648 = vcmask 1048512
    %v649 = vsel %vm648, %v647, %v642
    %651 = vst [vmem:[#allocation3] sm:$0x1] %v649
    // Predicated region
    $region30: #{tpu_custom_call.1} parent=1 // pred_check
      _
    $region31: #{tpu_custom_call.1} parent=1 // pred_check_branch
      %653 = sbr.rel (0) target = $region33
    $region32: #{tpu_custom_call.1} parent=1 // pred_region
      %s655 = ssub.s32 16, 16
      %656 = vsyncadd [#allocation4], %s655
      %s658 = sshll.u32 [#allocation3], 4
      %s659 = int_to_ptr.vmem [resolvable:$true] %s658
      %661 = dma.vmem_to_hbm [thread:$0]  %s659, 16, %s7, [#allocation4]
    $region33: #{tpu_custom_call.1} parent=1 // pred_fallthru
      _
    // Predicated region
    $region34: #{tpu_custom_call.1} parent=1 // pred_check
      _
    $region35: #{tpu_custom_call.1} parent=1 // pred_check_branch
      %663 = sbr.rel (0) target = $region37
    $region36: #{tpu_custom_call.1} parent=1 // pred_region
      %664 = dma.done [#allocation4], 16
    $region37: #{tpu_custom_call.1} parent=1 // pred_fallthru
      _
    %665 = vsyncpa [#allocation4], 1

</llo_original>
